<compile_context>
chip_gen: v7x
topology: tpu7x:2x2x1
jax: 0.10.0
libtpu: 0.0.40
codegen_flags: <defaults>
</compile_context>

<pallas_src>
import functools

import jax
import jax.numpy as jnp
from jax.experimental import pallas as pl
from jax.experimental.pallas import tpu as pltpu

IN_DIM = 128
BN_EPS = 1e-5
_STEP_COST_ROWS = 256          # ~0.35 us fixed per-grid-step cost, in row-equivalents
_MIB = 1024 * 1024


def _round_up(x, m):
    return ((x + m - 1) // m) * m


# ----------------------------------------------------------------------------
# Pallas kernel: full MLP for a tile of TM rows (eval-BN folded into weights).
# ----------------------------------------------------------------------------
def mlp_kernel(x_ref, w0_ref, b0_ref, wh_ref, bh_ref, wo_ref, bo_ref, out_ref,
               *, num_hidden, act_dtype):
    bf16 = jnp.bfloat16

    def bias_relu(z_f32, b):
        # act_dtype == bf16 (v6e/v7x): one downcast, then bias+ReLU on bf16
        # vregs (halves VALU / single-vst-slot pressure that co-saturates
        # with the MXU).  act_dtype == f32 (v5e: no bf16 VALU): keep
        # elementwise math in f32; the single downcast happens at the next
        # matmul operand instead.
        if act_dtype == bf16:
            return jnp.maximum(z_f32.astype(bf16) + b, 0)
        return jnp.maximum(z_f32 + b, 0)

    # Layer 0: Linear(128, E) (BN folded), bias + ReLU.  Dropout(p=0) == id.
    z = jnp.dot(x_ref[...], w0_ref[...], preferred_element_type=jnp.float32)
    h = bias_relu(z, b0_ref[...])

    # Hidden layers: Linear(E, E) (BN folded) + ReLU.  Static unroll.
    for i in range(num_hidden):
        w = wh_ref[i]                                     # (E, E), bf16
        z = jnp.dot(h.astype(bf16), w, preferred_element_type=jnp.float32)
        h = bias_relu(z, bh_ref[i])

    # Output head Linear(E, 1): VPU/XLU lane reduction (avoids an N=1 MXU pass).
    # TODO(synk): the (tm, 1) output block uses masked stores; output bytes are
    # ~1/64 of the bf16 input stream, so the lane-dense-output rewrite is
    # deferred until profiling shows the step epilogue as the tail.
    y = jnp.sum(h.astype(jnp.float32) * wo_ref[...], axis=-1, keepdims=True)
    out_ref[...] = (y + bo_ref[...]).astype(out_ref.dtype)


# ----------------------------------------------------------------------------
# VMEM budget: double-buffered operands + f32 activation temporaries + margin.
# ----------------------------------------------------------------------------
def _vmem_limit_bytes(tm, emb, num_hidden):
    e_pad = _round_up(emb, 128)
    weights = (IN_DIM * e_pad + num_hidden * e_pad * e_pad) * 2        # bf16
    biases = (num_hidden + 2) * e_pad * 4 + 256
    x_tile = tm * IN_DIM * 2                                           # bf16
    out_tile = tm * 128 * 4                                            # lane-padded
    acts = 4 * tm * e_pad * 4                                          # f32 temporaries
    total = 2 * (weights + biases + x_tile + out_tile) + acts + 2 * _MIB
    return int(max(16 * _MIB, min(_round_up(total, _MIB), 48 * _MIB)))


# ----------------------------------------------------------------------------
# Wrapper: pallas_call over row tiles.
# ----------------------------------------------------------------------------
def mlp_pallas(params, x, *, tm, act_dtype):
    n, in_dim = x.shape
    assert in_dim == IN_DIM
    assert n % tm == 0
    emb = params["w0"].shape[1]
    num_hidden = params["wh"].shape[0]
    assert num_hidden >= 1, "num_mlp_layers must be >= 2"

    kernel = functools.partial(mlp_kernel, num_hidden=num_hidden,
                               act_dtype=act_dtype)
    b0 = params["b0"].astype(act_dtype)
    bh = params["bh"].astype(act_dtype)

    # TODO(synk): the constant-weight operands could use
    # pipeline_mode=pl.Buffered(1) to drop their second pipeline buffer
    # (~0.7 MiB at emb=300); kept on the known-good default path for now.
    return pl.pallas_call(
        kernel,
        out_shape=jax.ShapeDtypeStruct((n, 1), jnp.float32),
        grid_spec=pltpu.PrefetchScalarGridSpec(
            num_scalar_prefetch=0,
            grid=(n // tm,),
            in_specs=[
                pl.BlockSpec((tm, IN_DIM), lambda i: (i, 0)),               # x rows (bf16)
                pl.BlockSpec((IN_DIM, emb), lambda i: (0, 0)),              # w0 (bf16, BN folded)
                pl.BlockSpec((1, emb), lambda i: (0, 0)),                   # b0 (act_dtype)
                pl.BlockSpec((num_hidden, emb, emb), lambda i: (0, 0, 0)),  # wh (bf16, BN folded)
                pl.BlockSpec((num_hidden, 1, emb), lambda i: (0, 0, 0)),    # bh (act_dtype)
                pl.BlockSpec((1, emb), lambda i: (0, 0)),                   # wo row (f32)
                pl.BlockSpec((1, 1), lambda i: (0, 0)),                     # bo (f32)
            ],
            out_specs=pl.BlockSpec((tm, 1), lambda i: (i, 0)),
        ),
        compiler_params=pltpu.CompilerParams(
            # TODO(synk): on v7x, try dimension_semantics=(pltpu.CORE_PARALLEL,)
            # to explicitly shard row-tile steps over the two TensorCores.
            dimension_semantics=("parallel",),
            vmem_limit_bytes=_vmem_limit_bytes(tm, emb, num_hidden),
        ),
    )(x, params["w0"], b0, params["wh"], bh, params["wo_row"], params["bo"])


# ----------------------------------------------------------------------------
# Tile selection & activation-dtype selection.
# ----------------------------------------------------------------------------
def _choose_tile(n, tm_max=1024):
    """Pick row tile tm and padded row count n_pad = grid_steps * tm.

    Cost model (units of wasted row-equivalents at emb~300):
      padded rows + ~256 rows per grid step (0.35 us fixed step cost)
      + n//2 penalty for single-step grids (one idle v7x TensorCore).
    Multi-step tiles are multiples of 128 (full MXU tiles / clean bf16
    packing); single-step tiles are multiples of 16 (bf16 sublane packing)
    so ragged n pads by at most 15 rows.
    """
    assert tm_max % 128 == 0
    if n <= 256:
        tm = _round_up(max(n, 16), 16)
        return tm, tm
    candidates = []
    if n <= tm_max:
        tm1 = _round_up(n, 16)
        candidates.append(((tm1 - n) + _STEP_COST_ROWS + n // 2, tm1, tm1))
    for tm in range(128, tm_max + 1, 128):
        steps = -(-n // tm)
        if steps < 2:
            continue
        n_pad = steps * tm
        candidates.append(((n_pad - n) + _STEP_COST_ROWS * steps, tm, n_pad))
    _, tm, n_pad = min(candidates)
    return tm, n_pad


def _default_act_dtype():
    """bf16 bias/ReLU on chips with a bf16 VALU (v6e/v7x); f32 on v5e and older."""
    try:
        kind = jax.devices()[0].device_kind.lower()
    except Exception:
        return jnp.float32
    if any(v in kind for v in ("v2", "v3", "v4", "v5")):
        return jnp.float32
    return jnp.bfloat16


def mlp_forward(params, x_root, *, tm_max=1024, act_dtype=None):
    """Mirrors MLP.forward semantics; returns an (n, 1) array of predictions.

    (PyTorch returns a Python list of per-sample tensors; returning a single
    stacked array avoids one device slice/transfer per row.)
    """
    if act_dtype is None:
        act_dtype = _default_act_dtype()
    x = x_root.reshape(-1, IN_DIM).astype(jnp.bfloat16)
    n = x.shape[0]
    tm, n_pad = _choose_tile(n, tm_max)
    if n_pad != n:
        # Padded rows produce garbage activations but are sliced off below.
        x = jnp.pad(x, ((0, n_pad - n), (0, 0)))
    y = mlp_pallas(params, x, tm=tm, act_dtype=act_dtype)
    return y[:n]


# ----------------------------------------------------------------------------
# Parameter construction (shapes from MLP.__init__) and BN folding.
# ----------------------------------------------------------------------------
def init_mlp_params(key, emb_dim=32, num_mlp_layers=5):
    """Raw f32 parameters mirroring the PyTorch module layout."""
    num_hidden = num_mlp_layers - 1
    ks = jax.random.split(key, 2 * num_mlp_layers + 2)

    def linear(kw, kb, fan_in, fan_out):
        bound = 1.0 / jnp.sqrt(fan_in)
        w = jax.random.uniform(kw, (fan_in, fan_out), jnp.float32, -bound, bound)
        b = jax.random.uniform(kb, (1, fan_out), jnp.float32, -bound, bound)
        return w, b

    w0, b0 = linear(ks[0], ks[1], IN_DIM, emb_dim)
    whs, bhs = [], []
    for i in range(num_hidden):
        w, b = linear(ks[2 + 2 * i], ks[3 + 2 * i], emb_dim, emb_dim)
        whs.append(w)
        bhs.append(b[None])  # (1, 1, emb)
    wo, bo = linear(ks[-2], ks[-1], emb_dim, 1)

    # BatchNorm1d defaults: gamma=1, beta=0, running_mean=0, running_var=1.
    gamma = jnp.ones((num_mlp_layers, 1, emb_dim), jnp.float32)
    beta = jnp.zeros((num_mlp_layers, 1, emb_dim), jnp.float32)
    run_mean = jnp.zeros((num_mlp_layers, 1, emb_dim), jnp.float32)
    run_var = jnp.ones((num_mlp_layers, 1, emb_dim), jnp.float32)
    scale = gamma / jnp.sqrt(run_var + BN_EPS)
    shift = beta - run_mean * scale

    return {
        "w0": w0, "b0": b0,
        "wh": jnp.stack(whs, 0),
        "bh": jnp.concatenate(bhs, 0),
        "bn_scale": scale, "bn_shift": shift,
        "wo": wo, "bo": bo,
    }


def fold_and_cast_params(raw):
    """Fold eval-mode BN into the Linear weights; cast matmul weights to bf16."""
    scale, shift = raw["bn_scale"], raw["bn_shift"]         # (L, 1, emb)
    w0 = (raw["w0"] * scale[0]).astype(jnp.bfloat16)        # (128, emb)
    b0 = raw["b0"] * scale[0] + shift[0]                    # (1, emb)    f32
    wh = (raw["wh"] * scale[1:]).astype(jnp.bfloat16)       # (H, emb, emb)
    bh = raw["bh"] * scale[1:] + shift[1:]                  # (H, 1, emb) f32
    return {
        "w0": w0, "b0": b0, "wh": wh, "bh": bh,
        "wo_row": raw["wo"].T.astype(jnp.float32),          # (1, emb)    f32
        "bo": raw["bo"].astype(jnp.float32),                # (1, 1)      f32
    }


# ----------------------------------------------------------------------------
# Pure-JAX references for verification.
# ----------------------------------------------------------------------------
def mlp_ref_f32(raw, x):
    """Full-precision semantics reference (raw params, BN as scale/shift)."""
    h = x @ raw["w0"] + raw["b0"]
    h = jnp.maximum(h * raw["bn_scale"][0] + raw["bn_shift"][0], 0.0)
    for i in range(raw["wh"].shape[0]):
        h = h @ raw["wh"][i] + raw["bh"][i]
        h = jnp.maximum(h * raw["bn_scale"][i + 1] + raw["bn_shift"][i + 1], 0.0)
    return h @ raw["wo"] + raw["bo"]


def mlp_ref_matched(p, x, act_dtype):
    """Reference with the same folded params / operand precision as the kernel."""
    f32, bf16 = jnp.float32, jnp.bfloat16

    def bias_relu(z, b):
        if act_dtype == bf16:
            return jnp.maximum(z.astype(bf16) + b.astype(bf16), 0)
        return jnp.maximum(z + b, 0)

    h = bias_relu(jnp.dot(x.astype(bf16), p["w0"], preferred_element_type=f32),
                  p["b0"])
    for i in range(p["wh"].shape[0]):
        h = bias_relu(jnp.dot(h.astype(bf16), p["wh"][i],
                              preferred_element_type=f32), p["bh"][i])
    return jnp.sum(h.astype(f32) * p["wo_row"], axis=-1, keepdims=True) + p["bo"]


if __name__ == "__main__":
    key = jax.random.PRNGKey(0)
    k_param, k_a, k_b, k_c = jax.random.split(key, 4)

    emb_dim = 32          # small stand-in for the default emb_dim=300
    num_mlp_layers = 5    # module default

    raw = init_mlp_params(k_param, emb_dim=emb_dim, num_mlp_layers=num_mlp_layers)
    params = fold_and_cast_params(raw)

    # Always exercise the f32 elementwise path; also exercise the bf16 path
    # when the local chip natively supports it (v6e/v7x default).
    act_dtypes = [jnp.float32]
    if _default_act_dtype() == jnp.bfloat16:
        act_dtypes.append(jnp.bfloat16)

    test_cases = [
        ("small", k_a, 16),      # single tiny grid step
        ("ragged", k_b, 520),    # non-multiple-of-128 batch -> minimal padding
        ("tiled", k_c, 1280),    # multi-step grid (tm=640, 2 steps, no padding)
    ]

    for act_dtype in act_dtypes:
        for name, k_in, n_rows in test_cases:
            x_root = jax.random.normal(k_in, (n_rows, IN_DIM), jnp.float32)
            y = jax.block_until_ready(
                mlp_forward(params, x_root, tm_max=1024, act_dtype=act_dtype))
            assert y.shape == (n_rows, 1), (name, y.shape)

            x2d = x_root.reshape(-1, IN_DIM)
            ref_matched = mlp_ref_matched(params, x2d, act_dtype)  # kernel precision
            ref_f32 = mlp_ref_f32(raw, x2d)                        # f32 semantics

            assert jnp.allclose(y, ref_matched, atol=1e-3, rtol=1e-3), (name, act_dtype)
            assert jnp.allclose(y, ref_f32, atol=5e-2, rtol=5e-2), (name, act_dtype)

    print("KERNEL_OK")
</pallas_src>

<mosaic_0001>
module attributes {stable_mosaic.version = 11 : i64} {
  func.func @mlp_kernel(%arg0: i32, %arg1: memref<16x128xbf16, #tpu.memory_space<vmem>>, %arg2: memref<128x32xbf16, #tpu.memory_space<vmem>>, %arg3: memref<1x32xf32, #tpu.memory_space<vmem>>, %arg4: memref<4x32x32xbf16, #tpu.memory_space<vmem>>, %arg5: memref<4x1x32xf32, #tpu.memory_space<vmem>>, %arg6: memref<1x32xf32, #tpu.memory_space<vmem>>, %arg7: memref<1x1xf32, #tpu.memory_space<vmem>>, %arg8: memref<16x1xf32, #tpu.memory_space<vmem>>) attributes {dimension_semantics = [#tpu.dimension_semantics<parallel>], iteration_bounds = array<i64: 1>, scalar_prefetch = 0 : i64, scratch_operands = 0 : i64, tpu.core_type = #tpu.core_type<tc>, window_params = [{transform_indices = @transform_0, window_bounds = array<i64: 16, 128>}, {pipeline_mode = #tpu.pipeline_mode<synchronous>, transform_indices = @transform_1, window_bounds = array<i64: 128, 32>}, {pipeline_mode = #tpu.pipeline_mode<synchronous>, transform_indices = @transform_2, window_bounds = array<i64: 1, 32>}, {pipeline_mode = #tpu.pipeline_mode<synchronous>, transform_indices = @transform_3, window_bounds = array<i64: 4, 32, 32>}, {pipeline_mode = #tpu.pipeline_mode<synchronous>, transform_indices = @transform_4, window_bounds = array<i64: 4, 1, 32>}, {pipeline_mode = #tpu.pipeline_mode<synchronous>, transform_indices = @transform_5, window_bounds = array<i64: 1, 32>}, {pipeline_mode = #tpu.pipeline_mode<synchronous>, transform_indices = @transform_6, window_bounds = array<i64: 1, 1>}, {transform_indices = @transform_7, window_bounds = array<i64: 16, 1>}]} {
    %c0 = arith.constant 0 : index
    %c0_0 = arith.constant 0 : index
    %0 = vector.load %arg1[%c0, %c0_0] : memref<16x128xbf16, #tpu.memory_space<vmem>>, vector<16x128xbf16>
    %c0_1 = arith.constant 0 : index
    %c0_2 = arith.constant 0 : index
    %1 = vector.load %arg2[%c0_1, %c0_2] : memref<128x32xbf16, #tpu.memory_space<vmem>>, vector<128x32xbf16>
    %cst = arith.constant dense<0.000000e+00> : vector<16x32xf32>
    %2 = tpu.matmul %0, %1, %cst {dimension_numbers = #tpu.dot_dimension_numbers<[1], [0], [0], [1], [0, 0, 1, 1], [], []>} : vector<16x128xbf16>, vector<128x32xbf16>, vector<16x32xf32> -> vector<16x32xf32>
    %c0_3 = arith.constant 0 : index
    %c0_4 = arith.constant 0 : index
    %3 = vector.load %arg3[%c0_3, %c0_4] : memref<1x32xf32, #tpu.memory_space<vmem>>, vector<1x32xf32>
    %4 = vector.broadcast %3 : vector<1x32xf32> to vector<16x32xf32>
    %5 = arith.addf %2, %4 : vector<16x32xf32>
    %cst_5 = arith.constant 0.000000e+00 : f32
    %6 = vector.broadcast %cst_5 : f32 to vector<16x32xf32>
    %7 = arith.maximumf %5, %6 : vector<16x32xf32>
    %c0_6 = arith.constant 0 : index
    %c0_7 = arith.constant 0 : index
    %c0_8 = arith.constant 0 : index
    %8 = vector.load %arg4[%c0_6, %c0_7, %c0_8] : memref<4x32x32xbf16, #tpu.memory_space<vmem>>, vector<1x32x32xbf16>
    %9 = vector.shape_cast %8 : vector<1x32x32xbf16> to vector<32x32xbf16>
    %10 = arith.truncf %7 : vector<16x32xf32> to vector<16x32xbf16>
    %cst_9 = arith.constant dense<0.000000e+00> : vector<16x32xf32>
    %11 = tpu.matmul %10, %9, %cst_9 {dimension_numbers = #tpu.dot_dimension_numbers<[1], [0], [0], [1], [0, 0, 1, 1], [], []>} : vector<16x32xbf16>, vector<32x32xbf16>, vector<16x32xf32> -> vector<16x32xf32>
    %c0_10 = arith.constant 0 : index
    %c0_11 = arith.constant 0 : index
    %c0_12 = arith.constant 0 : index
    %12 = vector.load %arg5[%c0_10, %c0_11, %c0_12] : memref<4x1x32xf32, #tpu.memory_space<vmem>>, vector<1x1x32xf32>
    %13 = vector.shape_cast %12 : vector<1x1x32xf32> to vector<1x32xf32>
    %14 = vector.broadcast %13 : vector<1x32xf32> to vector<16x32xf32>
    %15 = arith.addf %11, %14 : vector<16x32xf32>
    %cst_13 = arith.constant 0.000000e+00 : f32
    %16 = vector.broadcast %cst_13 : f32 to vector<16x32xf32>
    %17 = arith.maximumf %15, %16 : vector<16x32xf32>
    %c1 = arith.constant 1 : index
    %c0_14 = arith.constant 0 : index
    %c0_15 = arith.constant 0 : index
    %18 = vector.load %arg4[%c1, %c0_14, %c0_15] : memref<4x32x32xbf16, #tpu.memory_space<vmem>>, vector<1x32x32xbf16>
    %19 = vector.shape_cast %18 : vector<1x32x32xbf16> to vector<32x32xbf16>
    %20 = arith.truncf %17 : vector<16x32xf32> to vector<16x32xbf16>
    %cst_16 = arith.constant dense<0.000000e+00> : vector<16x32xf32>
    %21 = tpu.matmul %20, %19, %cst_16 {dimension_numbers = #tpu.dot_dimension_numbers<[1], [0], [0], [1], [0, 0, 1, 1], [], []>} : vector<16x32xbf16>, vector<32x32xbf16>, vector<16x32xf32> -> vector<16x32xf32>
    %c1_17 = arith.constant 1 : index
    %c0_18 = arith.constant 0 : index
    %c0_19 = arith.constant 0 : index
    %22 = vector.load %arg5[%c1_17, %c0_18, %c0_19] : memref<4x1x32xf32, #tpu.memory_space<vmem>>, vector<1x1x32xf32>
    %23 = vector.shape_cast %22 : vector<1x1x32xf32> to vector<1x32xf32>
    %24 = vector.broadcast %23 : vector<1x32xf32> to vector<16x32xf32>
    %25 = arith.addf %21, %24 : vector<16x32xf32>
    %cst_20 = arith.constant 0.000000e+00 : f32
    %26 = vector.broadcast %cst_20 : f32 to vector<16x32xf32>
    %27 = arith.maximumf %25, %26 : vector<16x32xf32>
    %c2 = arith.constant 2 : index
    %c0_21 = arith.constant 0 : index
    %c0_22 = arith.constant 0 : index
    %28 = vector.load %arg4[%c2, %c0_21, %c0_22] : memref<4x32x32xbf16, #tpu.memory_space<vmem>>, vector<1x32x32xbf16>
    %29 = vector.shape_cast %28 : vector<1x32x32xbf16> to vector<32x32xbf16>
    %30 = arith.truncf %27 : vector<16x32xf32> to vector<16x32xbf16>
    %cst_23 = arith.constant dense<0.000000e+00> : vector<16x32xf32>
    %31 = tpu.matmul %30, %29, %cst_23 {dimension_numbers = #tpu.dot_dimension_numbers<[1], [0], [0], [1], [0, 0, 1, 1], [], []>} : vector<16x32xbf16>, vector<32x32xbf16>, vector<16x32xf32> -> vector<16x32xf32>
    %c2_24 = arith.constant 2 : index
    %c0_25 = arith.constant 0 : index
    %c0_26 = arith.constant 0 : index
    %32 = vector.load %arg5[%c2_24, %c0_25, %c0_26] : memref<4x1x32xf32, #tpu.memory_space<vmem>>, vector<1x1x32xf32>
    %33 = vector.shape_cast %32 : vector<1x1x32xf32> to vector<1x32xf32>
    %34 = vector.broadcast %33 : vector<1x32xf32> to vector<16x32xf32>
    %35 = arith.addf %31, %34 : vector<16x32xf32>
    %cst_27 = arith.constant 0.000000e+00 : f32
    %36 = vector.broadcast %cst_27 : f32 to vector<16x32xf32>
    %37 = arith.maximumf %35, %36 : vector<16x32xf32>
    %c3 = arith.constant 3 : index
    %c0_28 = arith.constant 0 : index
    %c0_29 = arith.constant 0 : index
    %38 = vector.load %arg4[%c3, %c0_28, %c0_29] : memref<4x32x32xbf16, #tpu.memory_space<vmem>>, vector<1x32x32xbf16>
    %39 = vector.shape_cast %38 : vector<1x32x32xbf16> to vector<32x32xbf16>
    %40 = arith.truncf %37 : vector<16x32xf32> to vector<16x32xbf16>
    %cst_30 = arith.constant dense<0.000000e+00> : vector<16x32xf32>
    %41 = tpu.matmul %40, %39, %cst_30 {dimension_numbers = #tpu.dot_dimension_numbers<[1], [0], [0], [1], [0, 0, 1, 1], [], []>} : vector<16x32xbf16>, vector<32x32xbf16>, vector<16x32xf32> -> vector<16x32xf32>
    %c3_31 = arith.constant 3 : index
    %c0_32 = arith.constant 0 : index
    %c0_33 = arith.constant 0 : index
    %42 = vector.load %arg5[%c3_31, %c0_32, %c0_33] : memref<4x1x32xf32, #tpu.memory_space<vmem>>, vector<1x1x32xf32>
    %43 = vector.shape_cast %42 : vector<1x1x32xf32> to vector<1x32xf32>
    %44 = vector.broadcast %43 : vector<1x32xf32> to vector<16x32xf32>
    %45 = arith.addf %41, %44 : vector<16x32xf32>
    %cst_34 = arith.constant 0.000000e+00 : f32
    %46 = vector.broadcast %cst_34 : f32 to vector<16x32xf32>
    %47 = arith.maximumf %45, %46 : vector<16x32xf32>
    %c0_35 = arith.constant 0 : index
    %c0_36 = arith.constant 0 : index
    %48 = vector.load %arg6[%c0_35, %c0_36] : memref<1x32xf32, #tpu.memory_space<vmem>>, vector<1x32xf32>
    %49 = vector.broadcast %48 : vector<1x32xf32> to vector<16x32xf32>
    %50 = arith.mulf %47, %49 : vector<16x32xf32>
    %cst_37 = arith.constant dense<0.000000e+00> : vector<16xf32>
    %51 = vector.multi_reduction <add>, %50, %cst_37 [1] : vector<16x32xf32> to vector<16xf32>
    %52 = vector.shape_cast %51 : vector<16xf32> to vector<16x1xf32>
    %c0_38 = arith.constant 0 : index
    %c0_39 = arith.constant 0 : index
    %53 = vector.load %arg7[%c0_38, %c0_39] : memref<1x1xf32, #tpu.memory_space<vmem>>, vector<1x1xf32>
    %54 = vector.broadcast %53 : vector<1x1xf32> to vector<16x1xf32>
    %55 = arith.addf %52, %54 : vector<16x1xf32>
    %c0_40 = arith.constant 0 : index
    %c0_41 = arith.constant 0 : index
    %56 = vector.load %arg8[%c0_40, %c0_41] : memref<16x1xf32, #tpu.memory_space<vmem>>, vector<16x1xf32>
    tpu.vector_store %arg8[%c0_40, %c0_41], %55 {strides = array<i32>} : memref<16x1xf32, #tpu.memory_space<vmem>>, vector<16x1xf32>,
    return
  }
  func.func @transform_0(%arg0: i32) -> (i32, i32) {
    %c0_i32 = arith.constant 0 : i32
    %c0_i32_0 = arith.constant 0 : i32
    return %arg0, %c0_i32 : i32, i32
  }
  func.func @transform_1(%arg0: i32) -> (i32, i32) {
    %c0_i32 = arith.constant 0 : i32
    %c0_i32_0 = arith.constant 0 : i32
    %c0_i32_1 = arith.constant 0 : i32
    return %c0_i32, %c0_i32_0 : i32, i32
  }
  func.func @transform_2(%arg0: i32) -> (i32, i32) {
    %c0_i32 = arith.constant 0 : i32
    %c0_i32_0 = arith.constant 0 : i32
    %c0_i32_1 = arith.constant 0 : i32
    return %c0_i32, %c0_i32_0 : i32, i32
  }
  func.func @transform_3(%arg0: i32) -> (i32, i32, i32) {
    %c0_i32 = arith.constant 0 : i32
    %c0_i32_0 = arith.constant 0 : i32
    %c0_i32_1 = arith.constant 0 : i32
    %c0_i32_2 = arith.constant 0 : i32
    return %c0_i32, %c0_i32_0, %c0_i32_1 : i32, i32, i32
  }
  func.func @transform_4(%arg0: i32) -> (i32, i32, i32) {
    %c0_i32 = arith.constant 0 : i32
    %c0_i32_0 = arith.constant 0 : i32
    %c0_i32_1 = arith.constant 0 : i32
    %c0_i32_2 = arith.constant 0 : i32
    return %c0_i32, %c0_i32_0, %c0_i32_1 : i32, i32, i32
  }
  func.func @transform_5(%arg0: i32) -> (i32, i32) {
    %c0_i32 = arith.constant 0 : i32
    %c0_i32_0 = arith.constant 0 : i32
    %c0_i32_1 = arith.constant 0 : i32
    return %c0_i32, %c0_i32_0 : i32, i32
  }
  func.func @transform_6(%arg0: i32) -> (i32, i32) {
    %c0_i32 = arith.constant 0 : i32
    %c0_i32_0 = arith.constant 0 : i32
    %c0_i32_1 = arith.constant 0 : i32
    return %c0_i32, %c0_i32_0 : i32, i32
  }
  func.func @transform_7(%arg0: i32) -> (i32, i32) {
    %c0_i32 = arith.constant 0 : i32
    %c0_i32_0 = arith.constant 0 : i32
    return %arg0, %c0_i32 : i32, i32
  }
}

</mosaic_0001>

<llo_original>
// kernel: tpu_custom_call.1
$region0: #{tpu_custom_call.1}
  #allocation0 [shape = 'u32[]', space=smem, size = 0x4, offset = 0x4, fixed_abs, tag = 'smem constant byte address 0x4 - core index']
  #allocation1 [shape = 'u32[144,128]{1,0:T(1,128)}', space=vmem, size = 0x12000, scoped, tag = 'internal scratch']
  #allocation2 [shape = 'f32[1,1]{1,0:T(1,128)S(1)}', space=vmem, size = 0x200, scoped, tag = 'scoped memory for tpu_custom_call.1']
  %s0 = inlined_call_operand.vmem [shape: bf16[16,128], index: 0, kind: input, shape index: {}]
  %s1 = inlined_call_operand.vmem [shape: bf16[128,32], index: 1, kind: input, shape index: {}]
  %s2 = inlined_call_operand.vmem [shape: f32[1,32], index: 2, kind: input, shape index: {}]
  %s3 = inlined_call_operand.vmem [shape: bf16[4,32,32], index: 3, kind: input, shape index: {}]
  %s4 = inlined_call_operand.vmem [shape: f32[4,1,32], index: 4, kind: input, shape index: {}]
  %s5 = inlined_call_operand.vmem [shape: f32[1,32], index: 5, kind: input, shape index: {}]
  %s6 = inlined_call_operand.<no memory space> [shape: f32[1,1], index: 6, kind: input, shape index: {}]
  %s7 = inlined_call_operand.vmem [shape: f32[16,1], index: 7, kind: output, shape index: {}]
  %s8 = sld [smem:[#allocation0]]
  $region38: #{tpu_custom_call.1} parent=0
    _
  %s10 = ssub.s32 1, %s8
  %s11 = scalar_select 0, %s10, %s8
  %v12 = vstv %s6
  %13 = vst [vmem:[#allocation2] sm:$0x1] %v12
  // Predicated region
  $region2: #{tpu_custom_call.1} parent=0 // pred_check
    _
  $region3: #{tpu_custom_call.1} parent=0 // pred_check_branch
    %15 = sbr.rel (0) target = $region5
  $region4: #{tpu_custom_call.1} parent=0 // pred_region
    _
  $region5: #{tpu_custom_call.1} parent=0 // pred_fallthru
    _
  // Predicated region
  $region6: #{tpu_custom_call.1} parent=0 // pred_check
    _
  $region7: #{tpu_custom_call.1} parent=0 // pred_check_branch
    %17 = sbr.rel (0) target = $region9
  $region8: #{tpu_custom_call.1} parent=0 // pred_region
    _
  $region9: #{tpu_custom_call.1} parent=0 // pred_fallthru
    _
  // Predicated region
  $region10: #{tpu_custom_call.1} parent=0 // pred_check
    _
  $region11: #{tpu_custom_call.1} parent=0 // pred_check_branch
    %19 = sbr.rel (0) target = $region13
  $region12: #{tpu_custom_call.1} parent=0 // pred_region
    _
  $region13: #{tpu_custom_call.1} parent=0 // pred_fallthru
    _
  // Predicated region
  $region14: #{tpu_custom_call.1} parent=0 // pred_check
    _
  $region15: #{tpu_custom_call.1} parent=0 // pred_check_branch
    %21 = sbr.rel (0) target = $region17
  $region16: #{tpu_custom_call.1} parent=0 // pred_region
    _
  $region17: #{tpu_custom_call.1} parent=0 // pred_fallthru
    _
  // Predicated region
  $region18: #{tpu_custom_call.1} parent=0 // pred_check
    _
  $region19: #{tpu_custom_call.1} parent=0 // pred_check_branch
    %23 = sbr.rel (0) target = $region21
  $region20: #{tpu_custom_call.1} parent=0 // pred_region
    _
  $region21: #{tpu_custom_call.1} parent=0 // pred_fallthru
    _
  // Predicated region
  $region22: #{tpu_custom_call.1} parent=0 // pred_check
    _
  $region23: #{tpu_custom_call.1} parent=0 // pred_check_branch
    %25 = sbr.rel (0) target = $region25
  $region24: #{tpu_custom_call.1} parent=0 // pred_region
    _
  $region25: #{tpu_custom_call.1} parent=0 // pred_fallthru
    _
  // Predicated region
  $region26: #{tpu_custom_call.1} parent=0 // pred_check
    _
  $region27: #{tpu_custom_call.1} parent=0 // pred_check_branch
    %27 = sbr.rel (0) target = $region29
  $region28: #{tpu_custom_call.1} parent=0 // pred_region
    _
  $region29: #{tpu_custom_call.1} parent=0 // pred_fallthru
    _
  %v29 = vld [vmem:[%s0] sm:$0xf]
  %v30 = vld [vmem:[%s0 + $0x4] sm:$0xf]
  %v31 = vld [vmem:[%s1] sm:$0xf]
  %v32 = vld [vmem:[%s1 + $0x4] sm:$0xf]
  %v33 = vld [vmem:[%s1 + $0x8] sm:$0xf]
  %v34 = vld [vmem:[%s1 + $0xc] sm:$0xf]
  %v35 = vld [vmem:[%s1 + $0x10] sm:$0xf]
  %v36 = vld [vmem:[%s1 + $0x14] sm:$0xf]
  %v37 = vld [vmem:[%s1 + $0x18] sm:$0xf]
  %v38 = vld [vmem:[%s1 + $0x1c] sm:$0xf]
  %v39 = vld [vmem:[%s1 + $0x20] sm:$0xf]
  %v40 = vld [vmem:[%s1 + $0x24] sm:$0xf]
  %v41 = vld [vmem:[%s1 + $0x28] sm:$0xf]
  %v42 = vld [vmem:[%s1 + $0x2c] sm:$0xf]
  %v43 = vld [vmem:[%s1 + $0x30] sm:$0xf]
  %v44 = vld [vmem:[%s1 + $0x34] sm:$0xf]
  %v45 = vld [vmem:[%s1 + $0x38] sm:$0xf]
  %v46 = vld [vmem:[%s1 + $0x3c] sm:$0xf]
  %v47 = vld [vmem:[%s2] sm:$0x1]
  %v49 = vlaneseq
  %v50 = vshrl.u32 %v49, 7
  %v51 = vsub.s32 0, %v50
  %v52 = vrot.slane %v47, %v51
  %v56 = vunpack.c.l.b16 %v29
  %v57 = vunpack.c.l.b16 %v30
  %v58 = vpack.c.b16 %v57, %v56
  %v76 = vunpack.c.l.b16 %v31
  %v77 = vunpack.c.l.b16 %v32
  %v78 = vunpack.c.l.b16 %v33
  %v79 = vunpack.c.l.b16 %v34
  %v80 = vunpack.c.l.b16 %v35
  %v81 = vunpack.c.l.b16 %v36
  %v82 = vunpack.c.l.b16 %v37
  %v83 = vunpack.c.l.b16 %v38
  %v84 = vunpack.c.l.b16 %v39
  %v85 = vunpack.c.l.b16 %v40
  %v86 = vunpack.c.l.b16 %v41
  %v87 = vunpack.c.l.b16 %v42
  %v88 = vunpack.c.l.b16 %v43
  %v89 = vunpack.c.l.b16 %v44
  %v90 = vunpack.c.l.b16 %v45
  %v91 = vunpack.c.l.b16 %v46
  %v92 = vpack.c.b16 %v77, %v76
  %v93 = vpack.c.b16 %v79, %v78
  %v94 = vpack.c.b16 %v81, %v80
  %v95 = vpack.c.b16 %v83, %v82
  %v96 = vpack.c.b16 %v85, %v84
  %v97 = vpack.c.b16 %v87, %v86
  %v98 = vpack.c.b16 %v89, %v88
  %v99 = vpack.c.b16 %v91, %v90
  %108 = vmatprep.subr.bf16.mxu0 0
  %109 = vmatpush1.bf16.msra.mxu0 %v92
  %110 = vmatprep.subr.bf16.mxu0 0
  %111 = vmatpush1.bf16.msra.mxu0 %v93
  %112 = vmatprep.subr.bf16.mxu0 0
  %113 = vmatpush1.bf16.msra.mxu0 %v94
  %114 = vmatprep.subr.bf16.mxu0 0
  %115 = vmatpush1.bf16.msra.mxu0 %v95
  %116 = vmatprep.subr.bf16.mxu0 0
  %117 = vmatpush1.bf16.msra.mxu0 %v96
  %118 = vmatprep.subr.bf16.mxu0 0
  %119 = vmatpush1.bf16.msra.mxu0 %v97
  %120 = vmatprep.subr.bf16.mxu0 0
  %121 = vmatpush1.bf16.msra.mxu0 %v98
  %122 = vmatprep.subr.bf16.mxu0 0
  %123 = vmatpush1.bf16.msra.mxu0 %v99
  %124 = vmatprep.subr.bf16.mxu0 0
  %125 = vmatpush1.bf16.msra.mxu0 0
  %126 = vmatprep.subr.bf16.mxu0 0
  %127 = vmatpush1.bf16.msra.mxu0 0
  %128 = vmatprep.subr.bf16.mxu0 0
  %129 = vmatpush1.bf16.msra.mxu0 0
  %130 = vmatprep.subr.bf16.mxu0 0
  %131 = vmatpush1.bf16.msra.mxu0 0
  %132 = vmatprep.subr.bf16.mxu0 0
  %133 = vmatpush1.bf16.msra.mxu0 0
  %134 = vmatprep.subr.bf16.mxu0 0
  %135 = vmatpush1.bf16.msra.mxu0 0
  %136 = vmatprep.subr.bf16.mxu0 0
  %137 = vmatpush1.bf16.msra.mxu0 0
  %138 = vmatprep.subr.bf16.mxu0 0
  %139 = vmatpush1.bf16.msra.mxu0 0
  %140 = vmatprep.mubr.bf16.mxu0 0
  %141 = vmatmul.mubr.bf16.gmra.mrb[0].mxu0 %v58
  %v142 = vpop.f32.mrb[0].mxu0
  %v143 = vadd.f32 %v52, %v142
  %v144 = vpop.f32.mrb[0].mxu0
  %v145 = vpop.f32.mrb[0].mxu0
  %v146 = vadd.f32 %v52, %v145
  %v147 = vpop.f32.mrb[0].mxu0
  %148 = vdwg.mxu0
  %v149 = vmax.f32 %v143, 0.0
  %v150 = vmax.f32 %v146, 0.0
  %v151 = vld [vmem:[%s3] sm:$0xf]
  %v152 = vld [vmem:[%s3 + $0x4] sm:$0xf]
  %v153 = vld [vmem:[%s3 + $0x8] sm:$0xf]
  %v154 = vld [vmem:[%s3 + $0xc] sm:$0xf]
  %v155 = vpack.c.bf16 %v150, %v149
  %v156 = vld [vmem:[%s4] sm:$0x1]
  %v158 = vlaneseq
  %v159 = vshrl.u32 %v158, 7
  %v160 = vsub.s32 0, %v159
  %v161 = vrot.slane %v156, %v160
  %v167 = vunpack.c.l.b16 %v151
  %v168 = vunpack.c.l.b16 %v152
  %v169 = vunpack.c.l.b16 %v153
  %v170 = vunpack.c.l.b16 %v154
  %v171 = vpack.c.b16 %v168, %v167
  %v172 = vpack.c.b16 %v170, %v169
  %vm175 = vcmask 261120
  %v177 = vsel %vm175, %v155, 0
  %179 = vmatprep.subr.bf16.mxu0 0
  %180 = vmatpush1.bf16.msra.mxu0 %v171
  %181 = vmatprep.subr.bf16.mxu0 0
  %182 = vmatpush1.bf16.msra.mxu0 %v172
  %183 = vmatprep.subr.bf16.mxu0 0
  %184 = vmatpush1.bf16.msra.mxu0 0
  %185 = vmatprep.subr.bf16.mxu0 0
  %186 = vmatpush1.bf16.msra.mxu0 0
  %187 = vmatprep.subr.bf16.mxu0 0
  %188 = vmatpush1.bf16.msra.mxu0 0
  %189 = vmatprep.subr.bf16.mxu0 0
  %190 = vmatpush1.bf16.msra.mxu0 0
  %191 = vmatprep.subr.bf16.mxu0 0
  %192 = vmatpush1.bf16.msra.mxu0 0
  %193 = vmatprep.subr.bf16.mxu0 0
  %194 = vmatpush1.bf16.msra.mxu0 0
  %195 = vmatprep.subr.bf16.mxu0 0
  %196 = vmatpush1.bf16.msra.mxu0 0
  %197 = vmatprep.subr.bf16.mxu0 0
  %198 = vmatpush1.bf16.msra.mxu0 0
  %199 = vmatprep.subr.bf16.mxu0 0
  %200 = vmatpush1.bf16.msra.mxu0 0
  %201 = vmatprep.subr.bf16.mxu0 0
  %202 = vmatpush1.bf16.msra.mxu0 0
  %203 = vmatprep.subr.bf16.mxu0 0
  %204 = vmatpush1.bf16.msra.mxu0 0
  %205 = vmatprep.subr.bf16.mxu0 0
  %206 = vmatpush1.bf16.msra.mxu0 0
  %207 = vmatprep.subr.bf16.mxu0 0
  %208 = vmatpush1.bf16.msra.mxu0 0
  %209 = vmatprep.subr.bf16.mxu0 0
  %210 = vmatpush1.bf16.msra.mxu0 0
  %211 = vmatprep.mubr.bf16.mxu0 0
  %212 = vmatmul.mubr.bf16.gmra.mrb[0].mxu0 %v177
  %v213 = vpop.f32.mrb[0].mxu0
  %v214 = vadd.f32 %v161, %v213
  %v215 = vpop.f32.mrb[0].mxu0
  %v216 = vpop.f32.mrb[0].mxu0
  %v217 = vadd.f32 %v161, %v216
  %v218 = vpop.f32.mrb[0].mxu0
  %219 = vdwg.mxu0
  %v220 = vmax.f32 %v214, 0.0
  %v221 = vmax.f32 %v217, 0.0
  %s222 = scalar_lea.vmem %s3, 16
  %v223 = vld [vmem:[%s222] sm:$0xf]
  %v224 = vld [vmem:[%s222 + $0x4] sm:$0xf]
  %v225 = vld [vmem:[%s222 + $0x8] sm:$0xf]
  %v226 = vld [vmem:[%s222 + $0xc] sm:$0xf]
  %v227 = vpack.c.bf16 %v221, %v220
  %s228 = scalar_lea.vmem %s4, 1
  %v229 = vld [vmem:[%s228] sm:$0x1]
  %v231 = vlaneseq
  %v232 = vshrl.u32 %v231, 7
  %v233 = vsub.s32 0, %v232
  %v234 = vrot.slane %v229, %v233
  %v240 = vunpack.c.l.b16 %v223
  %v241 = vunpack.c.l.b16 %v224
  %v242 = vunpack.c.l.b16 %v225
  %v243 = vunpack.c.l.b16 %v226
  %v244 = vpack.c.b16 %v241, %v240
  %v245 = vpack.c.b16 %v243, %v242
  %v249 = vsel %vm175, %v227, 0
  %251 = vmatprep.subr.bf16.mxu0 0
  %252 = vmatpush1.bf16.msra.mxu0 %v244
  %253 = vmatprep.subr.bf16.mxu0 0
  %254 = vmatpush1.bf16.msra.mxu0 %v245
  %255 = vmatprep.subr.bf16.mxu0 0
  %256 = vmatpush1.bf16.msra.mxu0 0
  %257 = vmatprep.subr.bf16.mxu0 0
  %258 = vmatpush1.bf16.msra.mxu0 0
  %259 = vmatprep.subr.bf16.mxu0 0
  %260 = vmatpush1.bf16.msra.mxu0 0
  %261 = vmatprep.subr.bf16.mxu0 0
  %262 = vmatpush1.bf16.msra.mxu0 0
  %263 = vmatprep.subr.bf16.mxu0 0
  %264 = vmatpush1.bf16.msra.mxu0 0
  %265 = vmatprep.subr.bf16.mxu0 0
  %266 = vmatpush1.bf16.msra.mxu0 0
  %267 = vmatprep.subr.bf16.mxu0 0
  %268 = vmatpush1.bf16.msra.mxu0 0
  %269 = vmatprep.subr.bf16.mxu0 0
  %270 = vmatpush1.bf16.msra.mxu0 0
  %271 = vmatprep.subr.bf16.mxu0 0
  %272 = vmatpush1.bf16.msra.mxu0 0
  %273 = vmatprep.subr.bf16.mxu0 0
  %274 = vmatpush1.bf16.msra.mxu0 0
  %275 = vmatprep.subr.bf16.mxu0 0
  %276 = vmatpush1.bf16.msra.mxu0 0
  %277 = vmatprep.subr.bf16.mxu0 0
  %278 = vmatpush1.bf16.msra.mxu0 0
  %279 = vmatprep.subr.bf16.mxu0 0
  %280 = vmatpush1.bf16.msra.mxu0 0
  %281 = vmatprep.subr.bf16.mxu0 0
  %282 = vmatpush1.bf16.msra.mxu0 0
  %283 = vmatprep.mubr.bf16.mxu0 0
  %284 = vmatmul.mubr.bf16.gmra.mrb[0].mxu0 %v249
  %v285 = vpop.f32.mrb[0].mxu0
  %v286 = vadd.f32 %v234, %v285
  %v287 = vpop.f32.mrb[0].mxu0
  %v288 = vpop.f32.mrb[0].mxu0
  %v289 = vadd.f32 %v234, %v288
  %v290 = vpop.f32.mrb[0].mxu0
  %291 = vdwg.mxu0
  %v292 = vmax.f32 %v286, 0.0
  %v293 = vmax.f32 %v289, 0.0
  %s294 = scalar_lea.vmem %s3, 32
  %v295 = vld [vmem:[%s294] sm:$0xf]
  %v296 = vld [vmem:[%s294 + $0x4] sm:$0xf]
  %v297 = vld [vmem:[%s294 + $0x8] sm:$0xf]
  %v298 = vld [vmem:[%s294 + $0xc] sm:$0xf]
  %v299 = vpack.c.bf16 %v293, %v292
  %s300 = scalar_lea.vmem %s4, 2
  %v301 = vld [vmem:[%s300] sm:$0x1]
  %v303 = vlaneseq
  %v304 = vshrl.u32 %v303, 7
  %v305 = vsub.s32 0, %v304
  %v306 = vrot.slane %v301, %v305
  %v312 = vunpack.c.l.b16 %v295
  %v313 = vunpack.c.l.b16 %v296
  %v314 = vunpack.c.l.b16 %v297
  %v315 = vunpack.c.l.b16 %v298
  %v316 = vpack.c.b16 %v313, %v312
  %v317 = vpack.c.b16 %v315, %v314
  %v321 = vsel %vm175, %v299, 0
  %323 = vmatprep.subr.bf16.mxu0 0
  %324 = vmatpush1.bf16.msra.mxu0 %v316
  %325 = vmatprep.subr.bf16.mxu0 0
  %326 = vmatpush1.bf16.msra.mxu0 %v317
  %327 = vmatprep.subr.bf16.mxu0 0
  %328 = vmatpush1.bf16.msra.mxu0 0
  %329 = vmatprep.subr.bf16.mxu0 0
  %330 = vmatpush1.bf16.msra.mxu0 0
  %331 = vmatprep.subr.bf16.mxu0 0
  %332 = vmatpush1.bf16.msra.mxu0 0
  %333 = vmatprep.subr.bf16.mxu0 0
  %334 = vmatpush1.bf16.msra.mxu0 0
  %335 = vmatprep.subr.bf16.mxu0 0
  %336 = vmatpush1.bf16.msra.mxu0 0
  %337 = vmatprep.subr.bf16.mxu0 0
  %338 = vmatpush1.bf16.msra.mxu0 0
  %339 = vmatprep.subr.bf16.mxu0 0
  %340 = vmatpush1.bf16.msra.mxu0 0
  %341 = vmatprep.subr.bf16.mxu0 0
  %342 = vmatpush1.bf16.msra.mxu0 0
  %343 = vmatprep.subr.bf16.mxu0 0
  %344 = vmatpush1.bf16.msra.mxu0 0
  %345 = vmatprep.subr.bf16.mxu0 0
  %346 = vmatpush1.bf16.msra.mxu0 0
  %347 = vmatprep.subr.bf16.mxu0 0
  %348 = vmatpush1.bf16.msra.mxu0 0
  %349 = vmatprep.subr.bf16.mxu0 0
  %350 = vmatpush1.bf16.msra.mxu0 0
  %351 = vmatprep.subr.bf16.mxu0 0
  %352 = vmatpush1.bf16.msra.mxu0 0
  %353 = vmatprep.subr.bf16.mxu0 0
  %354 = vmatpush1.bf16.msra.mxu0 0
  %355 = vmatprep.mubr.bf16.mxu0 0
  %356 = vmatmul.mubr.bf16.gmra.mrb[0].mxu0 %v321
  %v357 = vpop.f32.mrb[0].mxu0
  %v358 = vadd.f32 %v306, %v357
  %v359 = vpop.f32.mrb[0].mxu0
  %v360 = vpop.f32.mrb[0].mxu0
  %v361 = vadd.f32 %v306, %v360
  %v362 = vpop.f32.mrb[0].mxu0
  %363 = vdwg.mxu0
  %v364 = vmax.f32 %v358, 0.0
  %v365 = vmax.f32 %v361, 0.0
  %s366 = scalar_lea.vmem %s3, 48
  %v367 = vld [vmem:[%s366] sm:$0xf]
  %v368 = vld [vmem:[%s366 + $0x4] sm:$0xf]
  %v369 = vld [vmem:[%s366 + $0x8] sm:$0xf]
  %v370 = vld [vmem:[%s366 + $0xc] sm:$0xf]
  %v371 = vpack.c.bf16 %v365, %v364
  %s372 = scalar_lea.vmem %s4, 3
  %v373 = vld [vmem:[%s372] sm:$0x1]
  %v375 = vlaneseq
  %v376 = vshrl.u32 %v375, 7
  %v377 = vsub.s32 0, %v376
  %v378 = vrot.slane %v373, %v377
  %v384 = vunpack.c.l.b16 %v367
  %v385 = vunpack.c.l.b16 %v368
  %v386 = vunpack.c.l.b16 %v369
  %v387 = vunpack.c.l.b16 %v370
  %v388 = vpack.c.b16 %v385, %v384
  %v389 = vpack.c.b16 %v387, %v386
  %v393 = vsel %vm175, %v371, 0
  %395 = vmatprep.subr.bf16.mxu0 0
  %396 = vmatpush1.bf16.msra.mxu0 %v388
  %397 = vmatprep.subr.bf16.mxu0 0
  %398 = vmatpush1.bf16.msra.mxu0 %v389
  %399 = vmatprep.subr.bf16.mxu0 0
  %400 = vmatpush1.bf16.msra.mxu0 0
  %401 = vmatprep.subr.bf16.mxu0 0
  %402 = vmatpush1.bf16.msra.mxu0 0
  %403 = vmatprep.subr.bf16.mxu0 0
  %404 = vmatpush1.bf16.msra.mxu0 0
  %405 = vmatprep.subr.bf16.mxu0 0
  %406 = vmatpush1.bf16.msra.mxu0 0
  %407 = vmatprep.subr.bf16.mxu0 0
  %408 = vmatpush1.bf16.msra.mxu0 0
  %409 = vmatprep.subr.bf16.mxu0 0
  %410 = vmatpush1.bf16.msra.mxu0 0
  %411 = vmatprep.subr.bf16.mxu0 0
  %412 = vmatpush1.bf16.msra.mxu0 0
  %413 = vmatprep.subr.bf16.mxu0 0
  %414 = vmatpush1.bf16.msra.mxu0 0
  %415 = vmatprep.subr.bf16.mxu0 0
  %416 = vmatpush1.bf16.msra.mxu0 0
  %417 = vmatprep.subr.bf16.mxu0 0
  %418 = vmatpush1.bf16.msra.mxu0 0
  %419 = vmatprep.subr.bf16.mxu0 0
  %420 = vmatpush1.bf16.msra.mxu0 0
  %421 = vmatprep.subr.bf16.mxu0 0
  %422 = vmatpush1.bf16.msra.mxu0 0
  %423 = vmatprep.subr.bf16.mxu0 0
  %424 = vmatpush1.bf16.msra.mxu0 0
  %425 = vmatprep.subr.bf16.mxu0 0
  %426 = vmatpush1.bf16.msra.mxu0 0
  %427 = vmatprep.mubr.bf16.mxu0 0
  %428 = vmatmul.mubr.bf16.gmra.mrb[0].mxu0 %v393
  %v429 = vpop.f32.mrb[0].mxu0
  %v430 = vadd.f32 %v378, %v429
  %v431 = vpop.f32.mrb[0].mxu0
  %v432 = vpop.f32.mrb[0].mxu0
  %v433 = vadd.f32 %v378, %v432
  %v434 = vpop.f32.mrb[0].mxu0
  %435 = vdwg.mxu0
  %v436 = vmax.f32 %v430, 0.0
  %v437 = vmax.f32 %v433, 0.0
  %v438 = vld [vmem:[%s5] sm:$0x1]
  %v440 = vlaneseq
  %v441 = vshrl.u32 %v440, 7
  %v442 = vsub.s32 0, %v441
  %v443 = vrot.slane %v438, %v442
  %v445 = vmul.f32 %v436, %v443
  %v446 = vmul.f32 %v437, %v443
  %v447 = vsel %vm175, %v445, 0.0
  %448 = vadd.xlane.f32.xlu0 %v447
  %v449 = vpop.xlane.xlu0 %448
  %v450 = vsel %vm175, %v446, 0.0
  %451 = vadd.xlane.f32.xlu0 %v450
  %v452 = vpop.xlane.xlu0 %451
  %v453 = vld [vmem:[#allocation2] sm:$0x1]
  %v455 = vlaneseq
  %v456 = vshrl.u32 %v455, 7
  %v457 = vsub.s32 0, %v456
  %v458 = vrot.slane %v453, %v457
  %v460 = vadd.f32 %v449, %v458
  %v461 = vadd.f32 %v452, %v458
  %vm462 = vcmask 7168
  %463 = vst.msk [vmem:[%s7] sm:$0xff] %vm462, %v460
  %464 = vst.msk [vmem:[%s7 + $0x8] sm:$0xff] %vm462, %v461
  // Predicated region
  $region30: #{tpu_custom_call.1} parent=0 // pred_check
    _
  $region31: #{tpu_custom_call.1} parent=0 // pred_check_branch
    %466 = sbr.rel (0) target = $region33
  $region32: #{tpu_custom_call.1} parent=0 // pred_region
    _
  $region33: #{tpu_custom_call.1} parent=0 // pred_fallthru
    _
  // Predicated region
  $region34: #{tpu_custom_call.1} parent=0 // pred_check
    _
  $region35: #{tpu_custom_call.1} parent=0 // pred_check_branch
    %468 = sbr.rel (0) target = $region37
  $region36: #{tpu_custom_call.1} parent=0 // pred_region
    _
  $region37: #{tpu_custom_call.1} parent=0 // pred_fallthru
    _

</llo_original>
